<compile_context>
chip_gen: v7x
topology: tpu7x:2x2x1
jax: 0.10.0
libtpu: 0.0.40
codegen_flags: <defaults>
</compile_context>

<pallas_src>
import jax
import jax.numpy as jnp
from jax.experimental import pallas as pl
from jax.experimental.pallas import tpu as pltpu


def _round_up(x: int, m: int) -> int:
    return ((x + m - 1) // m) * m


def _vmem_budget_bytes() -> int:
    """Scoped-VMEM limit to request: ~90% of physical per-core VMEM."""
    cap = 64 * 1024 * 1024  # conservative fallback: v7x per-TensorCore VMEM
    try:
        cap = int(pltpu.get_tpu_info().vmem_capacity_bytes)
    except Exception:
        pass
    return max(32 * 1024 * 1024, int(cap * 0.9))


def _num_tensorcores() -> int:
    """2 on dual-TensorCore chips (v7x, v4/v5p megacore), else 1."""
    try:
        kind = jax.devices()[0].device_kind.lower()
    except Exception:
        return 1
    for tag in ("v7", "7x", "v5p", "v4"):
        if tag in kind:
            return 2
    return 1


def _pick_tm(n_rows: int, lane_vmem: int, stream_itemsizes, vmem_limit: int,
             static_bytes: int, num_tc: int, extra_per_row: int = 0) -> int:
    """Token-tile size: big enough to amortize per-step overhead, VMEM-safe."""
    max_item = max(stream_itemsizes)
    # Target ~4 MiB per streaming tile (per-step overhead is ~0.35 us).
    target = (4 * 1024 * 1024) // max(1, lane_vmem * max_item)
    tm = min(4096, max(256, target))
    # x, base and out tiles are each double-buffered by the pipeline.
    per_row = 2 * lane_vmem * sum(stream_itemsizes) + extra_per_row
    budget = int(vmem_limit * 0.85) - static_bytes
    if budget > 0:
        tm = min(tm, max(8, budget // max(1, per_row)))
    tm = max(8, (tm // 8) * 8)
    # Never use a block taller than the array: if the whole problem fits in
    # one tile, shrink to the array height (full-dim exception covers rows<8).
    if tm >= n_rows:
        if n_rows % 8 == 0 or n_rows < 8:
            tm = n_rows
        else:
            tm = max(8, (n_rows // 8) * 8)
    # Dual-TensorCore chips: prefer an even step count so both cores get equal
    # work.  Single-TC chips (v5e/v6e) keep the largest tile / fewest steps.
    if num_tc >= 2:
        steps = pl.cdiv(n_rows, tm)
        if steps % 2 == 1:
            tm2 = max(8, _round_up(pl.cdiv(n_rows, steps + 1), 8))
            if tm2 <= n_rows and pl.cdiv(n_rows, tm2) % 2 == 0:
                tm = tm2
    return max(1, tm)


# ----------------------------------------------------------------------------
# Kernels
# ----------------------------------------------------------------------------

def _lora_packed_kernel(x_ref, w_ref, base_ref, o_ref):
    # x_ref:    (tm, 128)  P tokens packed per lane row
    # w_ref:    (128, 128) block-diagonal alpha*(A@B)
    # base_ref: (tm, 128)  packed output of the frozen attention block
    lora = jnp.dot(x_ref[...], w_ref[...], preferred_element_type=jnp.float32)
    o_ref[...] = (base_ref[...].astype(jnp.float32) + lora).astype(o_ref.dtype)


def _lora_general_kernel(x_ref, a_ref, b_ref, base_ref, o_ref):
    # x_ref:    (tm, H);  a_ref: (H, R) with alpha folded in;  b_ref: (R, H)
    xa = jnp.dot(x_ref[...], a_ref[...], preferred_element_type=jnp.float32)
    lora = jnp.dot(xa, b_ref[...], preferred_element_type=jnp.float32)
    o_ref[...] = (base_ref[...].astype(jnp.float32) + lora).astype(o_ref.dtype)


# ----------------------------------------------------------------------------
# Wrapper
# ----------------------------------------------------------------------------

def lora_attention_forward(x, A, B, base, alpha, *, tm=None):
    """out = base + alpha * (x @ A @ B).

    x, base: [N, H];  A: [H, R];  B: [R, H].  f32 accumulation throughout.
    alpha may be a Python float or a JAX scalar; it is folded into the tiny
    precomputed weights outside the kernel (no kernel recompile per alpha).
    """
    N, H = x.shape
    R = A.shape[1]
    assert A.shape == (H, R) and B.shape == (R, H) and base.shape == (N, H)

    out_dtype = jnp.result_type(x.dtype, base.dtype)
    num_tc = _num_tensorcores()
    vmem_limit = _vmem_budget_bytes()
    alpha_f = jnp.asarray(alpha, dtype=jnp.float32)

    x_item = jnp.dtype(x.dtype).itemsize
    base_item = jnp.dtype(out_dtype).itemsize
    out_item = jnp.dtype(out_dtype).itemsize

    use_packed = (H <= 128) and (128 % H == 0)

    if use_packed:
        # ---- packed / merged-weight path (H = TRANSFORMER_D_MODEL <= 128) ----
        P = 128 // H
        # W = alpha * (A @ B)  (H x H, tiny) computed once in f32 by XLA, then
        # tiled block-diagonally so P packed tokens per row stay independent.
        W = jnp.dot(A.astype(jnp.float32), B.astype(jnp.float32),
                    preferred_element_type=jnp.float32) * alpha_f
        Wp = jnp.kron(jnp.eye(P, dtype=jnp.float32), W).astype(x.dtype)

        Nr = pl.cdiv(N, P)
        Npad = Nr * P
        internal_base = (Npad != N) or (base.dtype != out_dtype)
        if Npad != N:
            # TODO(synk): the (< P)-row tail forces one padded copy; a tiny
            #             separate tail computation would avoid it entirely.
            x_in = jnp.pad(x, ((0, Npad - N), (0, 0)))
            base_in = jnp.pad(base.astype(out_dtype), ((0, Npad - N), (0, 0)))
        else:
            x_in = x
            base_in = base if base.dtype == out_dtype else base.astype(out_dtype)

        # Row-major [Npad, H] -> [Nr, P*H] is a pure relayout (no HBM blowup).
        xp = x_in.reshape(Nr, P * H)
        bp = base_in.reshape(Nr, P * H)

        lane = P * H  # == 128, lane-dense
        static = 2 * 128 * 128 * jnp.dtype(Wp.dtype).itemsize  # double-buffered W
        if tm is None:
            tm = _pick_tm(Nr, lane, (x_item, base_item, out_item),
                          vmem_limit, static, num_tc)
        tm = min(tm, max(1, Nr)) if tm > Nr else tm

        out_p = pl.pallas_call(
            _lora_packed_kernel,
            out_shape=jax.ShapeDtypeStruct((Nr, lane), out_dtype),
            grid_spec=pltpu.PrefetchScalarGridSpec(
                num_scalar_prefetch=0,
                grid=(pl.cdiv(Nr, tm),),
                in_specs=[
                    pl.BlockSpec((tm, lane), lambda i: (i, 0)),    # packed x
                    pl.BlockSpec((lane, lane), lambda i: (0, 0)),  # Wp (whole)
                    pl.BlockSpec((tm, lane), lambda i: (i, 0)),    # packed base
                ],
                out_specs=pl.BlockSpec((tm, lane), lambda i: (i, 0)),
            ),
            # Alias the internally created base copy to the output (safe:
            # identity index maps -> block i is read before it is written).
            input_output_aliases=({2: 0} if internal_base else {}),
            compiler_params=pltpu.CompilerParams(
                dimension_semantics=("parallel",),
                vmem_limit_bytes=vmem_limit,
            ),
        )(xp, Wp, bp)

        out = out_p.reshape(Npad, H)
        return out[:N] if Npad != N else out

    # ---- general path (H > 128 or 128 % H != 0): no padding at all ----
    A_s = (A.astype(jnp.float32) * alpha_f).astype(x.dtype)   # alpha folded in
    B_c = B if B.dtype == x.dtype else B.astype(x.dtype)
    internal_base = base.dtype != out_dtype
    base_in = base if not internal_base else base.astype(out_dtype)

    lane_vmem = _round_up(H, 128)   # in-VMEM lane footprint of a (tm, H) tile
    static = (2 * _round_up(H, 8) * _round_up(R, 128) * jnp.dtype(A_s.dtype).itemsize
              + 2 * _round_up(R, 8) * _round_up(H, 128) * jnp.dtype(B_c.dtype).itemsize)
    extra_per_row = _round_up(R, 128) * 4  # f32 (tm, R) intermediate
    if tm is None:
        tm = _pick_tm(N, lane_vmem, (x_item, base_item, out_item),
                      vmem_limit, static, num_tc, extra_per_row)

    out = pl.pallas_call(
        _lora_general_kernel,
        out_shape=jax.ShapeDtypeStruct((N, H), out_dtype),
        grid_spec=pltpu.PrefetchScalarGridSpec(
            num_scalar_prefetch=0,
            grid=(pl.cdiv(N, tm),),
            in_specs=[
                pl.BlockSpec((tm, H), lambda i: (i, 0)),   # x tile
                pl.BlockSpec((H, R), lambda i: (0, 0)),    # alpha*A (whole)
                pl.BlockSpec((R, H), lambda i: (0, 0)),    # B (whole)
                pl.BlockSpec((tm, H), lambda i: (i, 0)),   # base tile
            ],
            out_specs=pl.BlockSpec((tm, H), lambda i: (i, 0)),
        ),
        input_output_aliases=({3: 0} if internal_base else {}),
        compiler_params=pltpu.CompilerParams(
            dimension_semantics=("parallel",),
            vmem_limit_bytes=vmem_limit,
        ),
    )(x, A_s, B_c, base_in)
    return out


if __name__ == "__main__":
    # Shapes consistent with the module: hidden_dim = TRANSFORMER_D_MODEL.
    batch, seq, hidden, rank = 2, 8, 32, 4
    alpha = 0.5

    key = jax.random.PRNGKey(0)
    kx, kb, ka, kB, kx2, kb2, ka2, kB2 = jax.random.split(key, 8)

    # ---- packed path (H = 32 -> 4 tokens per lane row) ----
    x = jax.random.normal(kx, (batch, seq, hidden), dtype=jnp.float32)
    base = jax.random.normal(kb, (batch, seq, hidden), dtype=jnp.float32)
    # LoRALayer zero-inits A; use small random A to exercise the matmul path,
    # and xavier-normal-style B as in reset_parameters().
    A = 0.01 * jax.random.normal(ka, (hidden, rank), dtype=jnp.float32)
    xavier_std = (2.0 / (rank + hidden)) ** 0.5
    B = xavier_std * jax.random.normal(kB, (rank, hidden), dtype=jnp.float32)

    out = lora_attention_forward(x.reshape(-1, hidden), A, B,
                                 base.reshape(-1, hidden), alpha)
    out = jax.block_until_ready(out).reshape(batch, seq, hidden)

    ref = base + alpha * jnp.einsum("bsh,hr,rk->bsk", x, A, B)
    assert out.shape == ref.shape and out.dtype == ref.dtype
    assert jnp.allclose(out, ref, atol=1e-4, rtol=1e-4), "packed path mismatch"

    # ---- general path (H not a divisor of 128, ragged N: no padding) ----
    n2, h2, r2 = 20, 160, 4
    x2 = jax.random.normal(kx2, (n2, h2), dtype=jnp.float32)
    base2 = jax.random.normal(kb2, (n2, h2), dtype=jnp.float32)
    A2 = 0.01 * jax.random.normal(ka2, (h2, r2), dtype=jnp.float32)
    B2 = ((2.0 / (r2 + h2)) ** 0.5) * jax.random.normal(kB2, (r2, h2), dtype=jnp.float32)

    out2 = jax.block_until_ready(lora_attention_forward(x2, A2, B2, base2, alpha))
    ref2 = base2 + alpha * (x2 @ A2 @ B2)
    assert out2.shape == ref2.shape and out2.dtype == ref2.dtype
    assert jnp.allclose(out2, ref2, atol=1e-4, rtol=1e-4), "general path mismatch"

    print("KERNEL_OK")
</pallas_src>

<mosaic_0001>
module attributes {stable_mosaic.version = 11 : i64} {
  func.func @_lora_packed_kernel(%arg0: i32, %arg1: memref<4x128xf32, #tpu.memory_space<vmem>>, %arg2: memref<128x128xf32, #tpu.memory_space<vmem>>, %arg3: memref<4x128xf32, #tpu.memory_space<vmem>>, %arg4: memref<4x128xf32, #tpu.memory_space<vmem>>) attributes {dimension_semantics = [#tpu.dimension_semantics<parallel>], iteration_bounds = array<i64: 1>, scalar_prefetch = 0 : i64, scratch_operands = 0 : i64, tpu.core_type = #tpu.core_type<tc>, window_params = [{transform_indices = @transform_0, window_bounds = array<i64: 4, 128>}, {pipeline_mode = #tpu.pipeline_mode<synchronous>, transform_indices = @transform_1, window_bounds = array<i64: 128, 128>}, {transform_indices = @transform_2, window_bounds = array<i64: 4, 128>}, {transform_indices = @transform_3, window_bounds = array<i64: 4, 128>}]} {
    %c0 = arith.constant 0 : index
    %c0_0 = arith.constant 0 : index
    %0 = vector.load %arg1[%c0, %c0_0] : memref<4x128xf32, #tpu.memory_space<vmem>>, vector<4x128xf32>
    %c0_1 = arith.constant 0 : index
    %c0_2 = arith.constant 0 : index
    %1 = vector.load %arg2[%c0_1, %c0_2] : memref<128x128xf32, #tpu.memory_space<vmem>>, vector<128x128xf32>
    %cst = arith.constant dense<0.000000e+00> : vector<4x128xf32>
    %2 = tpu.matmul %0, %1, %cst {dimension_numbers = #tpu.dot_dimension_numbers<[1], [0], [0], [1], [0, 0, 1, 1], [], []>} : vector<4x128xf32>, vector<128x128xf32>, vector<4x128xf32> -> vector<4x128xf32>
    %c0_3 = arith.constant 0 : index
    %c0_4 = arith.constant 0 : index
    %3 = vector.load %arg3[%c0_3, %c0_4] : memref<4x128xf32, #tpu.memory_space<vmem>>, vector<4x128xf32>
    %4 = arith.addf %3, %2 : vector<4x128xf32>
    %c0_5 = arith.constant 0 : index
    %c0_6 = arith.constant 0 : index
    %5 = vector.load %arg4[%c0_5, %c0_6] : memref<4x128xf32, #tpu.memory_space<vmem>>, vector<4x128xf32>
    tpu.vector_store %arg4[%c0_5, %c0_6], %4 {strides = array<i32>} : memref<4x128xf32, #tpu.memory_space<vmem>>, vector<4x128xf32>,
    return
  }
  func.func @transform_0(%arg0: i32) -> (i32, i32) {
    %c0_i32 = arith.constant 0 : i32
    %c0_i32_0 = arith.constant 0 : i32
    return %arg0, %c0_i32 : i32, i32
  }
  func.func @transform_1(%arg0: i32) -> (i32, i32) {
    %c0_i32 = arith.constant 0 : i32
    %c0_i32_0 = arith.constant 0 : i32
    %c0_i32_1 = arith.constant 0 : i32
    return %c0_i32, %c0_i32_0 : i32, i32
  }
  func.func @transform_2(%arg0: i32) -> (i32, i32) {
    %c0_i32 = arith.constant 0 : i32
    %c0_i32_0 = arith.constant 0 : i32
    return %arg0, %c0_i32 : i32, i32
  }
  func.func @transform_3(%arg0: i32) -> (i32, i32) {
    %c0_i32 = arith.constant 0 : i32
    %c0_i32_0 = arith.constant 0 : i32
    return %arg0, %c0_i32 : i32, i32
  }
}

</mosaic_0001>

<llo_original>
// kernel: tpu_custom_call.1
$region0: #{tpu_custom_call.1}
  #allocation0 [shape = 'u32[]', space=smem, size = 0x4, offset = 0x4, fixed_abs, tag = 'smem constant byte address 0x4 - core index']
  #allocation1 [shape = 'u32[144,128]{1,0:T(1,128)}', space=vmem, size = 0x12000, scoped, tag = 'internal scratch']
  %s0 = inlined_call_operand.hbm [shape: f32[4,128], index: 0, kind: input, shape index: {}]
  %s1 = inlined_call_operand.hbm [shape: f32[128,128], index: 1, kind: input, shape index: {}]
  %s2 = inlined_call_operand.vmem [shape: f32[4,128], index: 2, kind: input, shape index: {}]
  %s3 = inlined_call_operand.hbm [shape: f32[4,128], index: 3, kind: output, shape index: {}]
  %s4 = sld [smem:[#allocation0]]
  $region30: #{tpu_custom_call.1} parent=0
    _
  %s6 = ssub.s32 1, %s4
  %s7 = scalar_select 0, %s6, %s4
  $region1: #{tpu_custom_call.1} parent=0
    #allocation2 [shape = 'u8[2048]{0}', space=vmem, size = 0x800, scoped, tag = 'input window, operand 0, single buffered']
    #allocation3 [shape = 's32[1]{0}', space=sflag, size = 0x4, scoped, tag = 'scoped memory for tpu_custom_call.1']
    #allocation4 [shape = 's32[1]{0}', space=sflag, size = 0x4, scoped, tag = 'scoped memory for tpu_custom_call.1']
    #allocation5 [shape = 'u8[65536]{0}', space=vmem, size = 0x10000, scoped, tag = 'input window, operand 1, single buffered']
    #allocation6 [shape = 's32[1]{0}', space=sflag, size = 0x4, scoped, tag = 'scoped memory for tpu_custom_call.1']
    #allocation7 [shape = 'u8[2048]{0}', space=vmem, size = 0x800, scoped, tag = 'output window, operand 0, single buffered']
    %8 = vsyncpa [#allocation3], 0
    %9 = vsyncpa [#allocation6], 0
    %10 = vsyncpa [#allocation4], 0
    // Predicated region
    $region2: #{tpu_custom_call.1} parent=1 // pred_check
      _
    $region3: #{tpu_custom_call.1} parent=1 // pred_check_branch
      %12 = sbr.rel (0) target = $region5
    $region4: #{tpu_custom_call.1} parent=1 // pred_region
      %s14 = ssub.s32 64, 64
      %15 = vsyncadd [#allocation3], %s14
      %s17 = sshll.u32 [#allocation2], 4
      %s18 = int_to_ptr.vmem [resolvable:$true] %s17
      %20 = dma.hbm_to_vmem [thread:$0]  %s0, 64, %s18, [#allocation3]
    $region5: #{tpu_custom_call.1} parent=1 // pred_fallthru
      _
    // Predicated region
    $region6: #{tpu_custom_call.1} parent=1 // pred_check
      _
    $region7: #{tpu_custom_call.1} parent=1 // pred_check_branch
      %22 = sbr.rel (0) target = $region9
    $region8: #{tpu_custom_call.1} parent=1 // pred_region
      %s24 = ssub.s32 2048, 2048
      %25 = vsyncadd [#allocation6], %s24
      %s26 = sshll.u32 [#allocation5], 4
      %s27 = int_to_ptr.vmem [resolvable:$true] %s26
      %32 = dma.hbm_to_vmem [thread:$0]  %s1, 2048, %s27, [#allocation6], 128, 128, 8
    $region9: #{tpu_custom_call.1} parent=1 // pred_fallthru
      _
    // Predicated region
    $region10: #{tpu_custom_call.1} parent=1 // pred_check
      _
    $region11: #{tpu_custom_call.1} parent=1 // pred_check_branch
      %34 = sbr.rel (0) target = $region13
    $region12: #{tpu_custom_call.1} parent=1 // pred_region
      _
    $region13: #{tpu_custom_call.1} parent=1 // pred_fallthru
      _
    // Predicated region
    $region14: #{tpu_custom_call.1} parent=1 // pred_check
      _
    $region15: #{tpu_custom_call.1} parent=1 // pred_check_branch
      %36 = sbr.rel (0) target = $region17
    $region16: #{tpu_custom_call.1} parent=1 // pred_region
      %37 = dma.done [#allocation3], 64
    $region17: #{tpu_custom_call.1} parent=1 // pred_fallthru
      _
    // Predicated region
    $region18: #{tpu_custom_call.1} parent=1 // pred_check
      _
    $region19: #{tpu_custom_call.1} parent=1 // pred_check_branch
      %39 = sbr.rel (0) target = $region21
    $region20: #{tpu_custom_call.1} parent=1 // pred_region
      %40 = dma.done [#allocation6], 2048
    $region21: #{tpu_custom_call.1} parent=1 // pred_fallthru
      _
    %v41 = vld [vmem:[#allocation2] sm:$0xf]
    %v42 = vld [vmem:[#allocation5] sm:$0xff]
    %v43 = vld [vmem:[#allocation5 + $0x8] sm:$0xff]
    %v44 = vld [vmem:[#allocation5 + $0x10] sm:$0xff]
    %v45 = vld [vmem:[#allocation5 + $0x18] sm:$0xff]
    %v46 = vld [vmem:[#allocation5 + $0x20] sm:$0xff]
    %v47 = vld [vmem:[#allocation5 + $0x28] sm:$0xff]
    %v48 = vld [vmem:[#allocation5 + $0x30] sm:$0xff]
    %v49 = vld [vmem:[#allocation5 + $0x38] sm:$0xff]
    %v50 = vld [vmem:[#allocation5 + $0x40] sm:$0xff]
    %v51 = vld [vmem:[#allocation5 + $0x48] sm:$0xff]
    %v52 = vld [vmem:[#allocation5 + $0x50] sm:$0xff]
    %v53 = vld [vmem:[#allocation5 + $0x58] sm:$0xff]
    %v54 = vld [vmem:[#allocation5 + $0x60] sm:$0xff]
    %v55 = vld [vmem:[#allocation5 + $0x68] sm:$0xff]
    %v56 = vld [vmem:[#allocation5 + $0x70] sm:$0xff]
    %v57 = vld [vmem:[#allocation5 + $0x78] sm:$0xff]
    %58 = vmatprep.subr.mxu0 0.0
    %59 = vmatpush1.msra.mxu0 %v42
    %60 = vmatprep.subr.mxu0 0.0
    %61 = vmatpush1.msra.mxu0 %v43
    %62 = vmatprep.subr.mxu0 0.0
    %63 = vmatpush1.msra.mxu0 %v44
    %64 = vmatprep.subr.mxu0 0.0
    %65 = vmatpush1.msra.mxu0 %v45
    %66 = vmatprep.subr.mxu0 0.0
    %67 = vmatpush1.msra.mxu0 %v46
    %68 = vmatprep.subr.mxu0 0.0
    %69 = vmatpush1.msra.mxu0 %v47
    %70 = vmatprep.subr.mxu0 0.0
    %71 = vmatpush1.msra.mxu0 %v48
    %72 = vmatprep.subr.mxu0 0.0
    %73 = vmatpush1.msra.mxu0 %v49
    %74 = vmatprep.subr.mxu0 0.0
    %75 = vmatpush1.msra.mxu0 %v50
    %76 = vmatprep.subr.mxu0 0.0
    %77 = vmatpush1.msra.mxu0 %v51
    %78 = vmatprep.subr.mxu0 0.0
    %79 = vmatpush1.msra.mxu0 %v52
    %80 = vmatprep.subr.mxu0 0.0
    %81 = vmatpush1.msra.mxu0 %v53
    %82 = vmatprep.subr.mxu0 0.0
    %83 = vmatpush1.msra.mxu0 %v54
    %84 = vmatprep.subr.mxu0 0.0
    %85 = vmatpush1.msra.mxu0 %v55
    %86 = vmatprep.subr.mxu0 0.0
    %87 = vmatpush1.msra.mxu0 %v56
    %88 = vmatprep.subr.mxu0 0.0
    %89 = vmatpush1.msra.mxu0 %v57
    %90 = vmatprep.subr.mxu0 0.0
    %91 = vmatpush1.msra.mxu0 0.0
    %92 = vmatprep.subr.mxu0 0.0
    %93 = vmatpush1.msra.mxu0 0.0
    %94 = vmatprep.subr.mxu0 0.0
    %95 = vmatpush1.msra.mxu0 0.0
    %96 = vmatprep.subr.mxu0 0.0
    %97 = vmatpush1.msra.mxu0 0.0
    %98 = vmatprep.subr.mxu0 0.0
    %99 = vmatpush1.msra.mxu0 0.0
    %100 = vmatprep.subr.mxu0 0.0
    %101 = vmatpush1.msra.mxu0 0.0
    %102 = vmatprep.subr.mxu0 0.0
    %103 = vmatpush1.msra.mxu0 0.0
    %104 = vmatprep.subr.mxu0 0.0
    %105 = vmatpush1.msra.mxu0 0.0
    %106 = vmatprep.subr.mxu0 0.0
    %107 = vmatpush1.msra.mxu0 0.0
    %108 = vmatprep.subr.mxu0 0.0
    %109 = vmatpush1.msra.mxu0 0.0
    %110 = vmatprep.subr.mxu0 0.0
    %111 = vmatpush1.msra.mxu0 0.0
    %112 = vmatprep.subr.mxu0 0.0
    %113 = vmatpush1.msra.mxu0 0.0
    %114 = vmatprep.subr.mxu0 0.0
    %115 = vmatpush1.msra.mxu0 0.0
    %116 = vmatprep.subr.mxu0 0.0
    %117 = vmatpush1.msra.mxu0 0.0
    %118 = vmatprep.subr.mxu0 0.0
    %119 = vmatpush1.msra.mxu0 0.0
    %120 = vmatprep.subr.mxu0 0.0
    %121 = vmatpush1.msra.mxu0 0.0
    %122 = vmatprep.mubr.f32.mxu0 0.0
    %123 = vmatmul.mubr.f32.gmra.mrb[0].mxu0 %v41
    %v124 = vpop.f32.mrb[0].mxu0
    %v125 = vadd.f32 0.0, %v124
    %v126 = vpop.f32.mrb[0].mxu0
    %127 = vdwg.mxu0
    %v128 = vld [vmem:[%s2] sm:$0xf]
    %v129 = vadd.f32 %v128, %v125
    %130 = vst [vmem:[#allocation7] sm:$0xf] %v129
    // Predicated region
    $region22: #{tpu_custom_call.1} parent=1 // pred_check
      _
    $region23: #{tpu_custom_call.1} parent=1 // pred_check_branch
      %132 = sbr.rel (0) target = $region25
    $region24: #{tpu_custom_call.1} parent=1 // pred_region
      %s134 = ssub.s32 64, 64
      %135 = vsyncadd [#allocation4], %s134
      %s137 = sshll.u32 [#allocation7], 4
      %s138 = int_to_ptr.vmem [resolvable:$true] %s137
      %140 = dma.vmem_to_hbm [thread:$0]  %s138, 64, %s3, [#allocation4]
    $region25: #{tpu_custom_call.1} parent=1 // pred_fallthru
      _
    // Predicated region
    $region26: #{tpu_custom_call.1} parent=1 // pred_check
      _
    $region27: #{tpu_custom_call.1} parent=1 // pred_check_branch
      %142 = sbr.rel (0) target = $region29
    $region28: #{tpu_custom_call.1} parent=1 // pred_region
      %143 = dma.done [#allocation4], 64
    $region29: #{tpu_custom_call.1} parent=1 // pred_fallthru
      _
    %144 = vsyncpa [#allocation3], 1
    %145 = vsyncpa [#allocation6], 1
    %146 = vsyncpa [#allocation4], 1

</llo_original>
